<compile_context>
chip_gen: v7x
topology: tpu7x:2x2x1
jax: 0.10.0
libtpu: 0.0.40
codegen_flags: <defaults>
</compile_context>

<pallas_src>
import jax
import jax.numpy as jnp
from jax import lax
from jax.experimental import pallas as pl
from jax.experimental.pallas import tpu as pltpu

EPS = 1e-5  # nn.BatchNorm2d default


def _is_pow2(n):
    return n > 0 and (n & (n - 1)) == 0


def _and(a, b):
    if a is None:
        return b
    if b is None:
        return a
    return jnp.logical_and(a, b)


def _make_kernel(N, CP, H, W):
    """CP is the sublane-padded channel count (multiple of 8)."""
    NP = N * H * W          # flattened batch*spatial -> lane axis
    inv_n = 1.0 / NP

    def conv3x3(x, w_ref):
        """3x3 'same' conv as 3 accumulated MXU matmuls (one per kernel row dy).

        x:     (CP, NP) f32, channels on sublanes, flattened n*H*W on lanes.
        w_ref: (3, CP, 3*CP) f32 Ref; w_ref[dy][o, dx*CP + i] = torch_w[o, i, dy, dx].
        """
        # Decode (row, col) of each lane of the flattened n*H*W + r*W + c index.
        # H, W are compile-time constants; powers of two -> shift/and (cheap VPU).
        q = lax.broadcasted_iota(jnp.int32, (CP, NP), 1)
        if _is_pow2(W) and _is_pow2(H):
            c = jnp.bitwise_and(q, W - 1)
            r = jnp.bitwise_and(jnp.right_shift(q, W.bit_length() - 1), H - 1)
        else:
            # non-power-of-two div/mod lowers to longer VPU sequences; still correct.
            c = q % W
            r = (q // W) % H
        # 'same'-padding validity predicates; they also kill the circular-shift
        # wrap-around / cross-sample reads.  dy == 1 / dx == 1 need no predicate.
        row_ok = (r >= 1, None, r <= H - 2)
        col_ok = (c >= 1, None, c <= W - 2)

        out = None
        for dy in range(3):
            taps = []
            for dx in range(3):
                d = (dy - 1) * W + (dx - 1)
                # want tap[:, q] = x[:, (q + d) % NP]; pltpu.roll follows jnp.roll
                # semantics (out[q] = in[(q - shift) % NP]) -> shift = -d (mod NP).
                t = x if d == 0 else pltpu.roll(x, (-d) % NP, axis=1)
                pred = _and(row_ok[dy], col_ok[dx])
                if pred is not None:
                    t = jnp.where(pred, t, 0.0)
                taps.append(t)
            # (3*CP, NP) per-row im2col: f32 concat (8-row tile aligned), then a single
            # bf16 cast of the MXU operand; accumulation stays f32.
            patches = jnp.concatenate(taps, axis=0).astype(jnp.bfloat16)
            part = jnp.dot(w_ref[dy].astype(jnp.bfloat16), patches,
                           preferred_element_type=jnp.float32)
            out = part if out is None else out + part
        return out

    def batchnorm(h, gamma, beta):
        # training-mode BatchNorm2d: biased batch stats over (N, H, W);
        # fused one-pass: var = E[h^2] - mean^2, one rsqrt (EUP).
        mean = jnp.sum(h, axis=1, keepdims=True) * inv_n
        var = jnp.sum(h * h, axis=1, keepdims=True) * inv_n - mean * mean
        return (h - mean) * lax.rsqrt(var + EPS) * gamma + beta

    def kernel(x_ref, w1_ref, g1_ref, be1_ref, w2_ref, g2_ref, be2_ref, out_ref):
        x = x_ref[...]                                      # (CP, NP) f32

        # conv1 -> BN1 -> ReLU  (conv bias dropped: cancelled by BN mean subtraction)
        h = conv3x3(x, w1_ref)
        h = batchnorm(h, g1_ref[...], be1_ref[...])
        h = jnp.maximum(h, 0.0)

        # conv2 -> BN2
        h = conv3x3(h, w2_ref)
        h = batchnorm(h, g2_ref[...], be2_ref[...])

        # residual add; (CP, NP) output is lane-dense -> full-width unmasked stores
        out_ref[...] = x + h

    return kernel


def prepare_params(params, channels):
    """One-time re-layout of the module parameters (outside the forward path)."""
    w1, b1, g1, be1, w2, b2, g2, be2 = params
    del b1, b2   # exactly cancelled by the training-mode BN mean subtraction
    C = channels
    CP = -(-C // 8) * 8                   # pad channels to the 8-sublane tile

    def flat_w(w):
        # torch OIHW (C,C,3,3) -> (3, CP, 3*CP); [dy, o, dx*CP + i] = w[o, i, dy, dx]
        wp = jnp.zeros((CP, CP, 3, 3), jnp.float32).at[:C, :C].set(
            w.astype(jnp.float32))
        return jnp.transpose(wp, (2, 0, 3, 1)).reshape(3, CP, 3 * CP)

    def col(v, fill):
        vp = jnp.pad(v.astype(jnp.float32), (0, CP - C), constant_values=fill)
        return vp.reshape(CP, 1)

    return (flat_w(w1), col(g1, 1.0), col(be1, 0.0),
            flat_w(w2), col(g2, 1.0), col(be2, 0.0))


def residual_block(x_nchw, prepped):
    """x_nchw: (N, C, H, W) float32 — same convention as the PyTorch module."""
    w1f, g1c, be1c, w2f, g2c, be2c = prepped
    N, C, H, W = x_nchw.shape
    CP = w1f.shape[1]
    NP = N * H * W

    # NCHW -> (CP, N*H*W): channels on sublanes, lane-dense flattened batch*spatial.
    # Under jit these fold into a single relayout copy feeding the kernel.
    x2 = jnp.transpose(x_nchw, (1, 0, 2, 3)).reshape(C, NP).astype(jnp.float32)
    if CP > C:
        x2 = jnp.pad(x2, ((0, CP - C), (0, 0)))

    vmem = pl.BlockSpec(memory_space=pltpu.MemorySpace.VMEM)
    out = pl.pallas_call(
        _make_kernel(N, CP, H, W),
        out_shape=jax.ShapeDtypeStruct((CP, NP), jnp.float32),
        in_specs=[vmem] * 7,
        out_specs=vmem,
    )(x2, w1f, g1c, be1c, w2f, g2c, be2c)

    # (CP, N*H*W) -> NCHW, dropping the channel padding.
    return jnp.transpose(out[:C].reshape(C, N, H, W), (1, 0, 2, 3)).astype(x_nchw.dtype)


def ref_forward(x, params):
    """Pure-JAX reference mirroring the PyTorch forward (train-mode BN)."""
    w1, b1, g1, be1, w2, b2, g2, be2 = params

    def conv(x, w, b):
        y = lax.conv_general_dilated(
            x, w, window_strides=(1, 1), padding=((1, 1), (1, 1)),
            dimension_numbers=("NCHW", "OIHW", "NCHW"),
            precision=lax.Precision.HIGHEST)
        return y + b.reshape(1, -1, 1, 1)

    def bn(y, g, be):
        mean = jnp.mean(y, axis=(0, 2, 3), keepdims=True)
        var = jnp.mean((y - mean) ** 2, axis=(0, 2, 3), keepdims=True)
        return ((y - mean) * lax.rsqrt(var + EPS) * g.reshape(1, -1, 1, 1)
                + be.reshape(1, -1, 1, 1))

    h = jnp.maximum(bn(conv(x, w1, b1), g1, be1), 0.0)
    h = bn(conv(h, w2, b2), g2, be2)
    return x + h


if __name__ == "__main__":
    N, C, H, W = 2, 4, 16, 16
    key = jax.random.PRNGKey(0)
    ks = jax.random.split(key, 9)
    x = jax.random.normal(ks[0], (N, C, H, W), jnp.float32)
    # deterministic synthetic parameters (shapes from Conv2d(C,C,3,1,1) / BatchNorm2d(C))
    w1 = 0.2 * jax.random.normal(ks[1], (C, C, 3, 3), jnp.float32)
    b1 = 0.1 * jax.random.normal(ks[2], (C,), jnp.float32)
    g1 = 1.0 + 0.1 * jax.random.normal(ks[3], (C,), jnp.float32)
    be1 = 0.1 * jax.random.normal(ks[4], (C,), jnp.float32)
    w2 = 0.2 * jax.random.normal(ks[5], (C, C, 3, 3), jnp.float32)
    b2 = 0.1 * jax.random.normal(ks[6], (C,), jnp.float32)
    g2 = 1.0 + 0.1 * jax.random.normal(ks[7], (C,), jnp.float32)
    be2 = 0.1 * jax.random.normal(ks[8], (C,), jnp.float32)
    params = (w1, b1, g1, be1, w2, b2, g2, be2)

    # Parameter re-layout runs once, outside the forward path.
    prepped = jax.block_until_ready(prepare_params(params, C))

    fwd = jax.jit(residual_block)
    out = jax.block_until_ready(fwd(x, prepped))
    ref = jax.block_until_ready(ref_forward(x, params))

    assert out.shape == x.shape and out.dtype == x.dtype
    err = float(jnp.max(jnp.abs(out - ref)))
    # bf16 MXU operands (f32 accumulation) + one-pass variance leave ~1e-2 worst-case
    # numeric noise vs the f32 HIGHEST-precision reference; structural bugs (wrong
    # tap / mask / BN stats) show up as O(0.3)+ errors, so 5e-2 still catches them.
    if err < 5e-2:
        print("KERNEL_OK")
    else:
        raise SystemExit(f"mismatch: max abs err = {err}")
</pallas_src>

<mosaic_0001>
module attributes {stable_mosaic.version = 11 : i64} {
  func.func @kernel(%arg0: memref<8x512xf32, #tpu.memory_space<vmem>>, %arg1: memref<3x8x24xf32, #tpu.memory_space<vmem>>, %arg2: memref<8x1xf32, #tpu.memory_space<vmem>>, %arg3: memref<8x1xf32, #tpu.memory_space<vmem>>, %arg4: memref<3x8x24xf32, #tpu.memory_space<vmem>>, %arg5: memref<8x1xf32, #tpu.memory_space<vmem>>, %arg6: memref<8x1xf32, #tpu.memory_space<vmem>>, %arg7: memref<8x512xf32, #tpu.memory_space<vmem>>) attributes {dimension_semantics = [], scalar_prefetch = 0 : i64, scratch_operands = 0 : i64, tpu.core_type = #tpu.core_type<tc>} {
    %c0 = arith.constant 0 : index
    %c0_0 = arith.constant 0 : index
    %0 = vector.load %arg0[%c0, %c0_0] : memref<8x512xf32, #tpu.memory_space<vmem>>, vector<8x512xf32>
    %1 = tpu.iota {dimensions = array<i32: 1>} : vector<8x512xi32>
    %c15_i32 = arith.constant 15 : i32
    %2 = vector.broadcast %c15_i32 : i32 to vector<8x512xi32>
    %3 = arith.andi %1, %2 : vector<8x512xi32>
    %c4_i32 = arith.constant 4 : i32
    %4 = vector.broadcast %c4_i32 : i32 to vector<8x512xi32>
    %5 = arith.shrsi %1, %4 : vector<8x512xi32>
    %c15_i32_1 = arith.constant 15 : i32
    %6 = vector.broadcast %c15_i32_1 : i32 to vector<8x512xi32>
    %7 = arith.andi %5, %6 : vector<8x512xi32>
    %c1_i32 = arith.constant 1 : i32
    %8 = vector.broadcast %c1_i32 : i32 to vector<8x512xi32>
    %9 = arith.cmpi sge, %7, %8 : vector<8x512xi32>
    %c14_i32 = arith.constant 14 : i32
    %10 = vector.broadcast %c14_i32 : i32 to vector<8x512xi32>
    %11 = arith.cmpi sle, %7, %10 : vector<8x512xi32>
    %c1_i32_2 = arith.constant 1 : i32
    %12 = vector.broadcast %c1_i32_2 : i32 to vector<8x512xi32>
    %13 = arith.cmpi sge, %3, %12 : vector<8x512xi32>
    %c14_i32_3 = arith.constant 14 : i32
    %14 = vector.broadcast %c14_i32_3 : i32 to vector<8x512xi32>
    %15 = arith.cmpi sle, %3, %14 : vector<8x512xi32>
    %c17_i32 = arith.constant 17 : i32
    %16 = tpu.dynamic_rotate %0 by %c17_i32 dim 1 : vector<8x512xf32>, i32 -> vector<8x512xf32>
    %17 = arith.andi %9, %13 : vector<8x512xi1>
    %cst = arith.constant 0.000000e+00 : f32
    %18 = vector.broadcast %cst : f32 to vector<8x512xf32>
    %19 = arith.select %17, %16, %18 : vector<8x512xi1>, vector<8x512xf32>
    %c16_i32 = arith.constant 16 : i32
    %20 = tpu.dynamic_rotate %0 by %c16_i32 dim 1 : vector<8x512xf32>, i32 -> vector<8x512xf32>
    %cst_4 = arith.constant 0.000000e+00 : f32
    %21 = vector.broadcast %cst_4 : f32 to vector<8x512xf32>
    %22 = arith.select %9, %20, %21 : vector<8x512xi1>, vector<8x512xf32>
    %c15_i32_5 = arith.constant 15 : i32
    %23 = tpu.dynamic_rotate %0 by %c15_i32_5 dim 1 : vector<8x512xf32>, i32 -> vector<8x512xf32>
    %24 = arith.andi %9, %15 : vector<8x512xi1>
    %cst_6 = arith.constant 0.000000e+00 : f32
    %25 = vector.broadcast %cst_6 : f32 to vector<8x512xf32>
    %26 = arith.select %24, %23, %25 : vector<8x512xi1>, vector<8x512xf32>
    %27 = tpu.concatenate %19, %22, %26 in 0 : vector<8x512xf32>, vector<8x512xf32>, vector<8x512xf32> -> vector<24x512xf32>
    %28 = arith.truncf %27 : vector<24x512xf32> to vector<24x512xbf16>
    %c0_7 = arith.constant 0 : index
    %c0_8 = arith.constant 0 : index
    %c0_9 = arith.constant 0 : index
    %29 = vector.load %arg1[%c0_7, %c0_8, %c0_9] : memref<3x8x24xf32, #tpu.memory_space<vmem>>, vector<1x8x24xf32>
    %30 = vector.shape_cast %29 : vector<1x8x24xf32> to vector<8x24xf32>
    %31 = arith.truncf %30 : vector<8x24xf32> to vector<8x24xbf16>
    %cst_10 = arith.constant dense<0.000000e+00> : vector<8x512xf32>
    %32 = tpu.matmul %31, %28, %cst_10 {dimension_numbers = #tpu.dot_dimension_numbers<[1], [0], [0], [1], [0, 0, 1, 1], [], []>} : vector<8x24xbf16>, vector<24x512xbf16>, vector<8x512xf32> -> vector<8x512xf32>
    %c1_i32_11 = arith.constant 1 : i32
    %33 = tpu.dynamic_rotate %0 by %c1_i32_11 dim 1 : vector<8x512xf32>, i32 -> vector<8x512xf32>
    %cst_12 = arith.constant 0.000000e+00 : f32
    %34 = vector.broadcast %cst_12 : f32 to vector<8x512xf32>
    %35 = arith.select %13, %33, %34 : vector<8x512xi1>, vector<8x512xf32>
    %c511_i32 = arith.constant 511 : i32
    %36 = tpu.dynamic_rotate %0 by %c511_i32 dim 1 : vector<8x512xf32>, i32 -> vector<8x512xf32>
    %cst_13 = arith.constant 0.000000e+00 : f32
    %37 = vector.broadcast %cst_13 : f32 to vector<8x512xf32>
    %38 = arith.select %15, %36, %37 : vector<8x512xi1>, vector<8x512xf32>
    %39 = tpu.concatenate %35, %0, %38 in 0 : vector<8x512xf32>, vector<8x512xf32>, vector<8x512xf32> -> vector<24x512xf32>
    %40 = arith.truncf %39 : vector<24x512xf32> to vector<24x512xbf16>
    %c1 = arith.constant 1 : index
    %c0_14 = arith.constant 0 : index
    %c0_15 = arith.constant 0 : index
    %41 = vector.load %arg1[%c1, %c0_14, %c0_15] : memref<3x8x24xf32, #tpu.memory_space<vmem>>, vector<1x8x24xf32>
    %42 = vector.shape_cast %41 : vector<1x8x24xf32> to vector<8x24xf32>
    %43 = arith.truncf %42 : vector<8x24xf32> to vector<8x24xbf16>
    %cst_16 = arith.constant dense<0.000000e+00> : vector<8x512xf32>
    %44 = tpu.matmul %43, %40, %cst_16 {dimension_numbers = #tpu.dot_dimension_numbers<[1], [0], [0], [1], [0, 0, 1, 1], [], []>} : vector<8x24xbf16>, vector<24x512xbf16>, vector<8x512xf32> -> vector<8x512xf32>
    %45 = arith.addf %32, %44 : vector<8x512xf32>
    %c497_i32 = arith.constant 497 : i32
    %46 = tpu.dynamic_rotate %0 by %c497_i32 dim 1 : vector<8x512xf32>, i32 -> vector<8x512xf32>
    %47 = arith.andi %11, %13 : vector<8x512xi1>
    %cst_17 = arith.constant 0.000000e+00 : f32
    %48 = vector.broadcast %cst_17 : f32 to vector<8x512xf32>
    %49 = arith.select %47, %46, %48 : vector<8x512xi1>, vector<8x512xf32>
    %c496_i32 = arith.constant 496 : i32
    %50 = tpu.dynamic_rotate %0 by %c496_i32 dim 1 : vector<8x512xf32>, i32 -> vector<8x512xf32>
    %cst_18 = arith.constant 0.000000e+00 : f32
    %51 = vector.broadcast %cst_18 : f32 to vector<8x512xf32>
    %52 = arith.select %11, %50, %51 : vector<8x512xi1>, vector<8x512xf32>
    %c495_i32 = arith.constant 495 : i32
    %53 = tpu.dynamic_rotate %0 by %c495_i32 dim 1 : vector<8x512xf32>, i32 -> vector<8x512xf32>
    %54 = arith.andi %11, %15 : vector<8x512xi1>
    %cst_19 = arith.constant 0.000000e+00 : f32
    %55 = vector.broadcast %cst_19 : f32 to vector<8x512xf32>
    %56 = arith.select %54, %53, %55 : vector<8x512xi1>, vector<8x512xf32>
    %57 = tpu.concatenate %49, %52, %56 in 0 : vector<8x512xf32>, vector<8x512xf32>, vector<8x512xf32> -> vector<24x512xf32>
    %58 = arith.truncf %57 : vector<24x512xf32> to vector<24x512xbf16>
    %c2 = arith.constant 2 : index
    %c0_20 = arith.constant 0 : index
    %c0_21 = arith.constant 0 : index
    %59 = vector.load %arg1[%c2, %c0_20, %c0_21] : memref<3x8x24xf32, #tpu.memory_space<vmem>>, vector<1x8x24xf32>
    %60 = vector.shape_cast %59 : vector<1x8x24xf32> to vector<8x24xf32>
    %61 = arith.truncf %60 : vector<8x24xf32> to vector<8x24xbf16>
    %cst_22 = arith.constant dense<0.000000e+00> : vector<8x512xf32>
    %62 = tpu.matmul %61, %58, %cst_22 {dimension_numbers = #tpu.dot_dimension_numbers<[1], [0], [0], [1], [0, 0, 1, 1], [], []>} : vector<8x24xbf16>, vector<24x512xbf16>, vector<8x512xf32> -> vector<8x512xf32>
    %63 = arith.addf %45, %62 : vector<8x512xf32>
    %c0_23 = arith.constant 0 : index
    %c0_24 = arith.constant 0 : index
    %64 = vector.load %arg2[%c0_23, %c0_24] : memref<8x1xf32, #tpu.memory_space<vmem>>, vector<8x1xf32>
    %c0_25 = arith.constant 0 : index
    %c0_26 = arith.constant 0 : index
    %65 = vector.load %arg3[%c0_25, %c0_26] : memref<8x1xf32, #tpu.memory_space<vmem>>, vector<8x1xf32>
    %cst_27 = arith.constant dense<0.000000e+00> : vector<8xf32>
    %66 = vector.multi_reduction <add>, %63, %cst_27 [1] : vector<8x512xf32> to vector<8xf32>
    %67 = vector.shape_cast %66 : vector<8xf32> to vector<8x1xf32>
    %cst_28 = arith.constant 0.001953125 : f32
    %68 = vector.broadcast %cst_28 : f32 to vector<8x1xf32>
    %69 = arith.mulf %67, %68 : vector<8x1xf32>
    %70 = arith.mulf %63, %63 : vector<8x512xf32>
    %cst_29 = arith.constant dense<0.000000e+00> : vector<8xf32>
    %71 = vector.multi_reduction <add>, %70, %cst_29 [1] : vector<8x512xf32> to vector<8xf32>
    %72 = vector.shape_cast %71 : vector<8xf32> to vector<8x1xf32>
    %cst_30 = arith.constant 0.001953125 : f32
    %73 = vector.broadcast %cst_30 : f32 to vector<8x1xf32>
    %74 = arith.mulf %72, %73 : vector<8x1xf32>
    %75 = arith.mulf %69, %69 : vector<8x1xf32>
    %76 = arith.subf %74, %75 : vector<8x1xf32>
    %77 = vector.broadcast %69 : vector<8x1xf32> to vector<8x512xf32>
    %78 = arith.subf %63, %77 : vector<8x512xf32>
    %cst_31 = arith.constant 9.99999974E-6 : f32
    %79 = vector.broadcast %cst_31 : f32 to vector<8x1xf32>
    %80 = arith.addf %76, %79 : vector<8x1xf32>
    %81 = math.rsqrt %80 : vector<8x1xf32>
    %82 = vector.broadcast %81 : vector<8x1xf32> to vector<8x512xf32>
    %83 = arith.mulf %78, %82 : vector<8x512xf32>
    %84 = vector.broadcast %64 : vector<8x1xf32> to vector<8x512xf32>
    %85 = arith.mulf %83, %84 : vector<8x512xf32>
    %86 = vector.broadcast %65 : vector<8x1xf32> to vector<8x512xf32>
    %87 = arith.addf %85, %86 : vector<8x512xf32>
    %cst_32 = arith.constant 0.000000e+00 : f32
    %88 = vector.broadcast %cst_32 : f32 to vector<8x512xf32>
    %89 = arith.maximumf %87, %88 : vector<8x512xf32>
    %90 = tpu.iota {dimensions = array<i32: 1>} : vector<8x512xi32>
    %c15_i32_33 = arith.constant 15 : i32
    %91 = vector.broadcast %c15_i32_33 : i32 to vector<8x512xi32>
    %92 = arith.andi %90, %91 : vector<8x512xi32>
    %c4_i32_34 = arith.constant 4 : i32
    %93 = vector.broadcast %c4_i32_34 : i32 to vector<8x512xi32>
    %94 = arith.shrsi %90, %93 : vector<8x512xi32>
    %c15_i32_35 = arith.constant 15 : i32
    %95 = vector.broadcast %c15_i32_35 : i32 to vector<8x512xi32>
    %96 = arith.andi %94, %95 : vector<8x512xi32>
    %c1_i32_36 = arith.constant 1 : i32
    %97 = vector.broadcast %c1_i32_36 : i32 to vector<8x512xi32>
    %98 = arith.cmpi sge, %96, %97 : vector<8x512xi32>
    %c14_i32_37 = arith.constant 14 : i32
    %99 = vector.broadcast %c14_i32_37 : i32 to vector<8x512xi32>
    %100 = arith.cmpi sle, %96, %99 : vector<8x512xi32>
    %c1_i32_38 = arith.constant 1 : i32
    %101 = vector.broadcast %c1_i32_38 : i32 to vector<8x512xi32>
    %102 = arith.cmpi sge, %92, %101 : vector<8x512xi32>
    %c14_i32_39 = arith.constant 14 : i32
    %103 = vector.broadcast %c14_i32_39 : i32 to vector<8x512xi32>
    %104 = arith.cmpi sle, %92, %103 : vector<8x512xi32>
    %c17_i32_40 = arith.constant 17 : i32
    %105 = tpu.dynamic_rotate %89 by %c17_i32_40 dim 1 : vector<8x512xf32>, i32 -> vector<8x512xf32>
    %106 = arith.andi %98, %102 : vector<8x512xi1>
    %cst_41 = arith.constant 0.000000e+00 : f32
    %107 = vector.broadcast %cst_41 : f32 to vector<8x512xf32>
    %108 = arith.select %106, %105, %107 : vector<8x512xi1>, vector<8x512xf32>
    %c16_i32_42 = arith.constant 16 : i32
    %109 = tpu.dynamic_rotate %89 by %c16_i32_42 dim 1 : vector<8x512xf32>, i32 -> vector<8x512xf32>
    %cst_43 = arith.constant 0.000000e+00 : f32
    %110 = vector.broadcast %cst_43 : f32 to vector<8x512xf32>
    %111 = arith.select %98, %109, %110 : vector<8x512xi1>, vector<8x512xf32>
    %c15_i32_44 = arith.constant 15 : i32
    %112 = tpu.dynamic_rotate %89 by %c15_i32_44 dim 1 : vector<8x512xf32>, i32 -> vector<8x512xf32>
    %113 = arith.andi %98, %104 : vector<8x512xi1>
    %cst_45 = arith.constant 0.000000e+00 : f32
    %114 = vector.broadcast %cst_45 : f32 to vector<8x512xf32>
    %115 = arith.select %113, %112, %114 : vector<8x512xi1>, vector<8x512xf32>
    %116 = tpu.concatenate %108, %111, %115 in 0 : vector<8x512xf32>, vector<8x512xf32>, vector<8x512xf32> -> vector<24x512xf32>
    %117 = arith.truncf %116 : vector<24x512xf32> to vector<24x512xbf16>
    %c0_46 = arith.constant 0 : index
    %c0_47 = arith.constant 0 : index
    %c0_48 = arith.constant 0 : index
    %118 = vector.load %arg4[%c0_46, %c0_47, %c0_48] : memref<3x8x24xf32, #tpu.memory_space<vmem>>, vector<1x8x24xf32>
    %119 = vector.shape_cast %118 : vector<1x8x24xf32> to vector<8x24xf32>
    %120 = arith.truncf %119 : vector<8x24xf32> to vector<8x24xbf16>
    %cst_49 = arith.constant dense<0.000000e+00> : vector<8x512xf32>
    %121 = tpu.matmul %120, %117, %cst_49 {dimension_numbers = #tpu.dot_dimension_numbers<[1], [0], [0], [1], [0, 0, 1, 1], [], []>} : vector<8x24xbf16>, vector<24x512xbf16>, vector<8x512xf32> -> vector<8x512xf32>
    %c1_i32_50 = arith.constant 1 : i32
    %122 = tpu.dynamic_rotate %89 by %c1_i32_50 dim 1 : vector<8x512xf32>, i32 -> vector<8x512xf32>
    %cst_51 = arith.constant 0.000000e+00 : f32
    %123 = vector.broadcast %cst_51 : f32 to vector<8x512xf32>
    %124 = arith.select %102, %122, %123 : vector<8x512xi1>, vector<8x512xf32>
    %c511_i32_52 = arith.constant 511 : i32
    %125 = tpu.dynamic_rotate %89 by %c511_i32_52 dim 1 : vector<8x512xf32>, i32 -> vector<8x512xf32>
    %cst_53 = arith.constant 0.000000e+00 : f32
    %126 = vector.broadcast %cst_53 : f32 to vector<8x512xf32>
    %127 = arith.select %104, %125, %126 : vector<8x512xi1>, vector<8x512xf32>
    %128 = tpu.concatenate %124, %89, %127 in 0 : vector<8x512xf32>, vector<8x512xf32>, vector<8x512xf32> -> vector<24x512xf32>
    %129 = arith.truncf %128 : vector<24x512xf32> to vector<24x512xbf16>
    %c1_54 = arith.constant 1 : index
    %c0_55 = arith.constant 0 : index
    %c0_56 = arith.constant 0 : index
    %130 = vector.load %arg4[%c1_54, %c0_55, %c0_56] : memref<3x8x24xf32, #tpu.memory_space<vmem>>, vector<1x8x24xf32>
    %131 = vector.shape_cast %130 : vector<1x8x24xf32> to vector<8x24xf32>
    %132 = arith.truncf %131 : vector<8x24xf32> to vector<8x24xbf16>
    %cst_57 = arith.constant dense<0.000000e+00> : vector<8x512xf32>
    %133 = tpu.matmul %132, %129, %cst_57 {dimension_numbers = #tpu.dot_dimension_numbers<[1], [0], [0], [1], [0, 0, 1, 1], [], []>} : vector<8x24xbf16>, vector<24x512xbf16>, vector<8x512xf32> -> vector<8x512xf32>
    %134 = arith.addf %121, %133 : vector<8x512xf32>
    %c497_i32_58 = arith.constant 497 : i32
    %135 = tpu.dynamic_rotate %89 by %c497_i32_58 dim 1 : vector<8x512xf32>, i32 -> vector<8x512xf32>
    %136 = arith.andi %100, %102 : vector<8x512xi1>
    %cst_59 = arith.constant 0.000000e+00 : f32
    %137 = vector.broadcast %cst_59 : f32 to vector<8x512xf32>
    %138 = arith.select %136, %135, %137 : vector<8x512xi1>, vector<8x512xf32>
    %c496_i32_60 = arith.constant 496 : i32
    %139 = tpu.dynamic_rotate %89 by %c496_i32_60 dim 1 : vector<8x512xf32>, i32 -> vector<8x512xf32>
    %cst_61 = arith.constant 0.000000e+00 : f32
    %140 = vector.broadcast %cst_61 : f32 to vector<8x512xf32>
    %141 = arith.select %100, %139, %140 : vector<8x512xi1>, vector<8x512xf32>
    %c495_i32_62 = arith.constant 495 : i32
    %142 = tpu.dynamic_rotate %89 by %c495_i32_62 dim 1 : vector<8x512xf32>, i32 -> vector<8x512xf32>
    %143 = arith.andi %100, %104 : vector<8x512xi1>
    %cst_63 = arith.constant 0.000000e+00 : f32
    %144 = vector.broadcast %cst_63 : f32 to vector<8x512xf32>
    %145 = arith.select %143, %142, %144 : vector<8x512xi1>, vector<8x512xf32>
    %146 = tpu.concatenate %138, %141, %145 in 0 : vector<8x512xf32>, vector<8x512xf32>, vector<8x512xf32> -> vector<24x512xf32>
    %147 = arith.truncf %146 : vector<24x512xf32> to vector<24x512xbf16>
    %c2_64 = arith.constant 2 : index
    %c0_65 = arith.constant 0 : index
    %c0_66 = arith.constant 0 : index
    %148 = vector.load %arg4[%c2_64, %c0_65, %c0_66] : memref<3x8x24xf32, #tpu.memory_space<vmem>>, vector<1x8x24xf32>
    %149 = vector.shape_cast %148 : vector<1x8x24xf32> to vector<8x24xf32>
    %150 = arith.truncf %149 : vector<8x24xf32> to vector<8x24xbf16>
    %cst_67 = arith.constant dense<0.000000e+00> : vector<8x512xf32>
    %151 = tpu.matmul %150, %147, %cst_67 {dimension_numbers = #tpu.dot_dimension_numbers<[1], [0], [0], [1], [0, 0, 1, 1], [], []>} : vector<8x24xbf16>, vector<24x512xbf16>, vector<8x512xf32> -> vector<8x512xf32>
    %152 = arith.addf %134, %151 : vector<8x512xf32>
    %c0_68 = arith.constant 0 : index
    %c0_69 = arith.constant 0 : index
    %153 = vector.load %arg5[%c0_68, %c0_69] : memref<8x1xf32, #tpu.memory_space<vmem>>, vector<8x1xf32>
    %c0_70 = arith.constant 0 : index
    %c0_71 = arith.constant 0 : index
    %154 = vector.load %arg6[%c0_70, %c0_71] : memref<8x1xf32, #tpu.memory_space<vmem>>, vector<8x1xf32>
    %cst_72 = arith.constant dense<0.000000e+00> : vector<8xf32>
    %155 = vector.multi_reduction <add>, %152, %cst_72 [1] : vector<8x512xf32> to vector<8xf32>
    %156 = vector.shape_cast %155 : vector<8xf32> to vector<8x1xf32>
    %cst_73 = arith.constant 0.001953125 : f32
    %157 = vector.broadcast %cst_73 : f32 to vector<8x1xf32>
    %158 = arith.mulf %156, %157 : vector<8x1xf32>
    %159 = arith.mulf %152, %152 : vector<8x512xf32>
    %cst_74 = arith.constant dense<0.000000e+00> : vector<8xf32>
    %160 = vector.multi_reduction <add>, %159, %cst_74 [1] : vector<8x512xf32> to vector<8xf32>
    %161 = vector.shape_cast %160 : vector<8xf32> to vector<8x1xf32>
    %cst_75 = arith.constant 0.001953125 : f32
    %162 = vector.broadcast %cst_75 : f32 to vector<8x1xf32>
    %163 = arith.mulf %161, %162 : vector<8x1xf32>
    %164 = arith.mulf %158, %158 : vector<8x1xf32>
    %165 = arith.subf %163, %164 : vector<8x1xf32>
    %166 = vector.broadcast %158 : vector<8x1xf32> to vector<8x512xf32>
    %167 = arith.subf %152, %166 : vector<8x512xf32>
    %cst_76 = arith.constant 9.99999974E-6 : f32
    %168 = vector.broadcast %cst_76 : f32 to vector<8x1xf32>
    %169 = arith.addf %165, %168 : vector<8x1xf32>
    %170 = math.rsqrt %169 : vector<8x1xf32>
    %171 = vector.broadcast %170 : vector<8x1xf32> to vector<8x512xf32>
    %172 = arith.mulf %167, %171 : vector<8x512xf32>
    %173 = vector.broadcast %153 : vector<8x1xf32> to vector<8x512xf32>
    %174 = arith.mulf %172, %173 : vector<8x512xf32>
    %175 = vector.broadcast %154 : vector<8x1xf32> to vector<8x512xf32>
    %176 = arith.addf %174, %175 : vector<8x512xf32>
    %177 = arith.addf %0, %176 : vector<8x512xf32>
    %c0_77 = arith.constant 0 : index
    %c0_78 = arith.constant 0 : index
    %178 = vector.load %arg7[%c0_77, %c0_78] : memref<8x512xf32, #tpu.memory_space<vmem>>, vector<8x512xf32>
    tpu.vector_store %arg7[%c0_77, %c0_78], %177 {strides = array<i32>} : memref<8x512xf32, #tpu.memory_space<vmem>>, vector<8x512xf32>,
    return
  }
}

</mosaic_0001>

<llo_original>
// kernel: residual_block.1
$region0: #{residual_block.1}
  #allocation0 [shape = 'u32[]', space=smem, size = 0x4, offset = 0x4, fixed_abs, tag = 'smem constant byte address 0x4 - core index']
  #allocation1 [shape = 'u32[144,128]{1,0:T(1,128)}', space=vmem, size = 0x12000, scoped, tag = 'internal scratch']
  %s0 = inlined_call_operand.vmem [shape: f32[8,512], index: 0, kind: input, shape index: {}]
  %s1 = inlined_call_operand.vmem [shape: f32[3,8,24], index: 1, kind: input, shape index: {}]
  %s2 = inlined_call_operand.vmem [shape: f32[8,1], index: 2, kind: input, shape index: {}]
  %s3 = inlined_call_operand.vmem [shape: f32[8,1], index: 3, kind: input, shape index: {}]
  %s4 = inlined_call_operand.vmem [shape: f32[3,8,24], index: 4, kind: input, shape index: {}]
  %s5 = inlined_call_operand.vmem [shape: f32[8,1], index: 5, kind: input, shape index: {}]
  %s6 = inlined_call_operand.vmem [shape: f32[8,1], index: 6, kind: input, shape index: {}]
  %s7 = inlined_call_operand.vmem [shape: f32[8,512], index: 7, kind: output, shape index: {}]
  %s8 = sld [smem:[#allocation0]]
  $region38: #{residual_block.1} parent=0
    _
  %s10 = ssub.s32 1, %s8
  %s11 = scalar_select 0, %s10, %s8
  // Predicated region
  $region2: #{residual_block.1} parent=0 // pred_check
    _
  $region3: #{residual_block.1} parent=0 // pred_check_branch
    %13 = sbr.rel (0) target = $region5
  $region4: #{residual_block.1} parent=0 // pred_region
    _
  $region5: #{residual_block.1} parent=0 // pred_fallthru
    _
  // Predicated region
  $region6: #{residual_block.1} parent=0 // pred_check
    _
  $region7: #{residual_block.1} parent=0 // pred_check_branch
    %15 = sbr.rel (0) target = $region9
  $region8: #{residual_block.1} parent=0 // pred_region
    _
  $region9: #{residual_block.1} parent=0 // pred_fallthru
    _
  // Predicated region
  $region10: #{residual_block.1} parent=0 // pred_check
    _
  $region11: #{residual_block.1} parent=0 // pred_check_branch
    %17 = sbr.rel (0) target = $region13
  $region12: #{residual_block.1} parent=0 // pred_region
    _
  $region13: #{residual_block.1} parent=0 // pred_fallthru
    _
  // Predicated region
  $region14: #{residual_block.1} parent=0 // pred_check
    _
  $region15: #{residual_block.1} parent=0 // pred_check_branch
    %19 = sbr.rel (0) target = $region17
  $region16: #{residual_block.1} parent=0 // pred_region
    _
  $region17: #{residual_block.1} parent=0 // pred_fallthru
    _
  // Predicated region
  $region18: #{residual_block.1} parent=0 // pred_check
    _
  $region19: #{residual_block.1} parent=0 // pred_check_branch
    %21 = sbr.rel (0) target = $region21
  $region20: #{residual_block.1} parent=0 // pred_region
    _
  $region21: #{residual_block.1} parent=0 // pred_fallthru
    _
  // Predicated region
  $region22: #{residual_block.1} parent=0 // pred_check
    _
  $region23: #{residual_block.1} parent=0 // pred_check_branch
    %23 = sbr.rel (0) target = $region25
  $region24: #{residual_block.1} parent=0 // pred_region
    _
  $region25: #{residual_block.1} parent=0 // pred_fallthru
    _
  // Predicated region
  $region26: #{residual_block.1} parent=0 // pred_check
    _
  $region27: #{residual_block.1} parent=0 // pred_check_branch
    %25 = sbr.rel (0) target = $region29
  $region28: #{residual_block.1} parent=0 // pred_region
    _
  $region29: #{residual_block.1} parent=0 // pred_fallthru
    _
  %v27 = vld [vmem:[%s0] sm:$0xff]
  %v28 = vld [vmem:[%s0 + $0x8] sm:$0xff]
  %v29 = vld [vmem:[%s0 + $0x10] sm:$0xff]
  %v30 = vld [vmem:[%s0 + $0x18] sm:$0xff]
  %v31 = vlaneseq
  %v32 = vand.u32 %v31, 127
  %v33 = vadd.s32 %v32, 128
  %v34 = vadd.s32 %v32, 256
  %v35 = vadd.s32 %v32, 384
  %v36 = vand.u32 %v32, 15
  %v37 = vand.u32 %v33, 15
  %v38 = vand.u32 %v34, 15
  %v39 = vand.u32 %v35, 15
  %v40 = vshra.s32 %v32, 4
  %v41 = vshra.s32 %v33, 4
  %v42 = vshra.s32 %v34, 4
  %v43 = vshra.s32 %v35, 4
  %v44 = vand.u32 %v40, 15
  %v45 = vand.u32 %v41, 15
  %v46 = vand.u32 %v42, 15
  %v47 = vand.u32 %v43, 15
  %vm48 = vcmp.ge.s32.totalorder %v44, 1
  %vm49 = vcmp.ge.s32.totalorder %v45, 1
  %vm50 = vcmp.ge.s32.totalorder %v46, 1
  %vm51 = vcmp.ge.s32.totalorder %v47, 1
  %vm52 = vcmp.le.s32.totalorder %v44, 14
  %vm53 = vcmp.le.s32.totalorder %v45, 14
  %vm54 = vcmp.le.s32.totalorder %v46, 14
  %vm55 = vcmp.le.s32.totalorder %v47, 14
  %vm56 = vcmp.ge.s32.totalorder %v36, 1
  %vm57 = vcmp.ge.s32.totalorder %v37, 1
  %vm58 = vcmp.ge.s32.totalorder %v38, 1
  %vm59 = vcmp.ge.s32.totalorder %v39, 1
  %vm60 = vcmp.le.s32.totalorder %v36, 14
  %vm61 = vcmp.le.s32.totalorder %v37, 14
  %vm62 = vcmp.le.s32.totalorder %v38, 14
  %vm63 = vcmp.le.s32.totalorder %v39, 14
  %64 = vrot.lane.b32.xlu0 %v27, 17
  %v65 = vpop.permute.xlu0 %64
  %66 = vrot.lane.b32.xlu0 %v28, 17
  %v67 = vpop.permute.xlu0 %66
  %68 = vrot.lane.b32.xlu0 %v29, 17
  %v69 = vpop.permute.xlu0 %68
  %70 = vrot.lane.b32.xlu0 %v30, 17
  %v71 = vpop.permute.xlu0 %70
  %vm72 = vcmp.lt.s32.totalorder %v32, 17
  %v73 = vsel %vm72, %v69, %v71
  %v74 = vsel %vm72, %v67, %v69
  %v75 = vsel %vm72, %v65, %v67
  %v76 = vsel %vm72, %v71, %v65
  %vm77 = vmand %vm48, %vm56
  %vm78 = vmand %vm49, %vm57
  %vm79 = vmand %vm50, %vm58
  %vm80 = vmand %vm51, %vm59
  %v81 = vsel %vm77, %v76, 0.0
  %v82 = vsel %vm78, %v75, 0.0
  %v83 = vsel %vm79, %v74, 0.0
  %v84 = vsel %vm80, %v73, 0.0
  %85 = vrot.lane.b32.xlu0 %v27, 16
  %v86 = vpop.permute.xlu0 %85
  %87 = vrot.lane.b32.xlu0 %v28, 16
  %v88 = vpop.permute.xlu0 %87
  %89 = vrot.lane.b32.xlu0 %v29, 16
  %v90 = vpop.permute.xlu0 %89
  %91 = vrot.lane.b32.xlu0 %v30, 16
  %v92 = vpop.permute.xlu0 %91
  %vm93 = vcmp.lt.s32.totalorder %v32, 16
  %v94 = vsel %vm93, %v90, %v92
  %v95 = vsel %vm93, %v88, %v90
  %v96 = vsel %vm93, %v86, %v88
  %v97 = vsel %vm93, %v92, %v86
  %v98 = vsel %vm48, %v97, 0.0
  %v99 = vsel %vm49, %v96, 0.0
  %v100 = vsel %vm50, %v95, 0.0
  %v101 = vsel %vm51, %v94, 0.0
  %102 = vrot.lane.b32.xlu0 %v27, 15
  %v103 = vpop.permute.xlu0 %102
  %104 = vrot.lane.b32.xlu0 %v28, 15
  %v105 = vpop.permute.xlu0 %104
  %106 = vrot.lane.b32.xlu0 %v29, 15
  %v107 = vpop.permute.xlu0 %106
  %108 = vrot.lane.b32.xlu0 %v30, 15
  %v109 = vpop.permute.xlu0 %108
  %vm110 = vcmp.lt.s32.totalorder %v32, 15
  %v111 = vsel %vm110, %v107, %v109
  %v112 = vsel %vm110, %v105, %v107
  %v113 = vsel %vm110, %v103, %v105
  %v114 = vsel %vm110, %v109, %v103
  %vm115 = vmand %vm48, %vm60
  %vm116 = vmand %vm49, %vm61
  %vm117 = vmand %vm50, %vm62
  %vm118 = vmand %vm51, %vm63
  %v119 = vsel %vm115, %v114, 0.0
  %v120 = vsel %vm116, %v113, 0.0
  %v121 = vsel %vm117, %v112, 0.0
  %v122 = vsel %vm118, %v111, 0.0
  %v123 = vpack.c.bf16 %v98, %v81
  %v124 = vpack.c.bf16 %v99, %v82
  %v125 = vpack.c.bf16 %v100, %v83
  %v126 = vpack.c.bf16 %v101, %v84
  %v127 = vpack.c.bf16 %v119, %v119
  %v128 = vpack.c.bf16 %v120, %v120
  %v129 = vpack.c.bf16 %v121, %v121
  %v130 = vpack.c.bf16 %v122, %v122
  %v131 = vld [vmem:[%s1] sm:$0xff]
  %v132 = vpack.c.bf16 %v131, %v131
  %133 = vrot.lane.b32.xlu0 %v27, 1
  %v134 = vpop.permute.xlu0 %133
  %135 = vrot.lane.b32.xlu0 %v28, 1
  %v136 = vpop.permute.xlu0 %135
  %137 = vrot.lane.b32.xlu0 %v29, 1
  %v138 = vpop.permute.xlu0 %137
  %139 = vrot.lane.b32.xlu0 %v30, 1
  %v140 = vpop.permute.xlu0 %139
  %vm141 = vcmp.lt.s32.totalorder %v32, 1
  %v142 = vsel %vm141, %v138, %v140
  %v143 = vsel %vm141, %v136, %v138
  %v144 = vsel %vm141, %v134, %v136
  %v145 = vsel %vm141, %v140, %v134
  %v146 = vsel %vm56, %v145, 0.0
  %v147 = vsel %vm57, %v144, 0.0
  %v148 = vsel %vm58, %v143, 0.0
  %v149 = vsel %vm59, %v142, 0.0
  %150 = vrot.lane.b32.xlu0 %v27, 127
  %v151 = vpop.permute.xlu0 %150
  %152 = vrot.lane.b32.xlu0 %v28, 127
  %v153 = vpop.permute.xlu0 %152
  %154 = vrot.lane.b32.xlu0 %v29, 127
  %v155 = vpop.permute.xlu0 %154
  %156 = vrot.lane.b32.xlu0 %v30, 127
  %v157 = vpop.permute.xlu0 %156
  %vm158 = vcmp.lt.s32.totalorder %v32, 127
  %v159 = vsel %vm158, %v155, %v157
  %v160 = vsel %vm158, %v153, %v155
  %v161 = vsel %vm158, %v151, %v153
  %v162 = vsel %vm158, %v157, %v151
  %v163 = vsel %vm60, %v161, 0.0
  %v164 = vsel %vm61, %v160, 0.0
  %v165 = vsel %vm62, %v159, 0.0
  %v166 = vsel %vm63, %v162, 0.0
  %v167 = vpack.c.bf16 %v27, %v146
  %v168 = vpack.c.bf16 %v28, %v147
  %v169 = vpack.c.bf16 %v29, %v148
  %v170 = vpack.c.bf16 %v30, %v149
  %v171 = vpack.c.bf16 %v163, %v163
  %v172 = vpack.c.bf16 %v164, %v164
  %v173 = vpack.c.bf16 %v165, %v165
  %v174 = vpack.c.bf16 %v166, %v166
  %s175 = scalar_lea.vmem %s1, 8
  %v176 = vld [vmem:[%s175] sm:$0xff]
  %v177 = vpack.c.bf16 %v176, %v176
  %vm178 = vcmask 195584
  %v180 = vsel %vm178, %v177, 0
  %vm182 = vcmask 1043456
  %v184 = vsel %vm182, %v171, 0
  %v187 = vsel %vm182, %v172, 0
  %v190 = vsel %vm182, %v173, 0
  %v193 = vsel %vm182, %v174, 0
  %195 = vmatprep.subr.bf16.mxu0 %v168
  %196 = vmatpush1.bf16.msra.mxu0 %v167
  %197 = vmatprep.subr.bf16.mxu0 %v187
  %198 = vmatpush1.bf16.msra.mxu0 %v184
  %199 = vmatprep.subr.bf16.mxu0 0
  %200 = vmatpush1.bf16.msra.mxu0 0
  %201 = vmatprep.subr.bf16.mxu0 0
  %202 = vmatpush1.bf16.msra.mxu0 0
  %203 = vmatprep.subr.bf16.mxu0 0
  %204 = vmatpush1.bf16.msra.mxu0 0
  %205 = vmatprep.subr.bf16.mxu0 0
  %206 = vmatpush1.bf16.msra.mxu0 0
  %207 = vmatprep.subr.bf16.mxu0 0
  %208 = vmatpush1.bf16.msra.mxu0 0
  %209 = vmatprep.subr.bf16.mxu0 0
  %210 = vmatpush1.bf16.msra.mxu0 0
  %211 = vmatprep.subr.bf16.mxu0 0
  %212 = vmatpush1.bf16.msra.mxu0 0
  %213 = vmatprep.subr.bf16.mxu0 0
  %214 = vmatpush1.bf16.msra.mxu0 0
  %215 = vmatprep.subr.bf16.mxu0 0
  %216 = vmatpush1.bf16.msra.mxu0 0
  %217 = vmatprep.subr.bf16.mxu0 0
  %218 = vmatpush1.bf16.msra.mxu0 0
  %219 = vmatprep.subr.bf16.mxu0 0
  %220 = vmatpush1.bf16.msra.mxu0 0
  %221 = vmatprep.subr.bf16.mxu0 0
  %222 = vmatpush1.bf16.msra.mxu0 0
  %223 = vmatprep.subr.bf16.mxu0 0
  %224 = vmatpush1.bf16.msra.mxu0 0
  %225 = vmatprep.subr.bf16.mxu0 0
  %226 = vmatpush1.bf16.msra.mxu0 0
  %227 = vmatprep.mubr.bf16.mxu0 0
  %228 = vmatmul.mubr.bf16.gmra.mrb[0].mxu0 %v180
  %v229 = vpop.f32.mrb[0].mxu0
  %v230 = vadd.f32 0.0, %v229
  %v231 = vpop.f32.mrb[0].mxu0
  %v232 = vadd.f32 0.0, %v231
  %v233 = vpop.f32.mrb[0].mxu0
  %v234 = vpop.f32.mrb[0].mxu0
  %235 = vdwg.mxu0
  %236 = vmatprep.subr.bf16.mxu0 %v170
  %237 = vmatpush1.bf16.msra.mxu0 %v169
  %238 = vmatprep.subr.bf16.mxu0 %v193
  %239 = vmatpush1.bf16.msra.mxu0 %v190
  %240 = vmatprep.subr.bf16.mxu0 0
  %241 = vmatpush1.bf16.msra.mxu0 0
  %242 = vmatprep.subr.bf16.mxu0 0
  %243 = vmatpush1.bf16.msra.mxu0 0
  %244 = vmatprep.subr.bf16.mxu0 0
  %245 = vmatpush1.bf16.msra.mxu0 0
  %246 = vmatprep.subr.bf16.mxu0 0
  %247 = vmatpush1.bf16.msra.mxu0 0
  %248 = vmatprep.subr.bf16.mxu0 0
  %249 = vmatpush1.bf16.msra.mxu0 0
  %250 = vmatprep.subr.bf16.mxu0 0
  %251 = vmatpush1.bf16.msra.mxu0 0
  %252 = vmatprep.subr.bf16.mxu0 0
  %253 = vmatpush1.bf16.msra.mxu0 0
  %254 = vmatprep.subr.bf16.mxu0 0
  %255 = vmatpush1.bf16.msra.mxu0 0
  %256 = vmatprep.subr.bf16.mxu0 0
  %257 = vmatpush1.bf16.msra.mxu0 0
  %258 = vmatprep.subr.bf16.mxu0 0
  %259 = vmatpush1.bf16.msra.mxu0 0
  %260 = vmatprep.subr.bf16.mxu0 0
  %261 = vmatpush1.bf16.msra.mxu0 0
  %262 = vmatprep.subr.bf16.mxu0 0
  %263 = vmatpush1.bf16.msra.mxu0 0
  %264 = vmatprep.subr.bf16.mxu0 0
  %265 = vmatpush1.bf16.msra.mxu0 0
  %266 = vmatprep.subr.bf16.mxu0 0
  %267 = vmatpush1.bf16.msra.mxu0 0
  %268 = vmatprep.mubr.bf16.mxu0 0
  %269 = vmatmul.mubr.bf16.gmra.mrb[0].mxu0 %v180
  %v270 = vpop.f32.mrb[0].mxu0
  %v271 = vadd.f32 0.0, %v270
  %v272 = vpop.f32.mrb[0].mxu0
  %v273 = vadd.f32 0.0, %v272
  %v274 = vpop.f32.mrb[0].mxu0
  %v275 = vpop.f32.mrb[0].mxu0
  %276 = vdwg.mxu0
  %v278 = vsel %vm178, %v132, 0
  %v281 = vsel %vm182, %v127, 0
  %v284 = vsel %vm182, %v128, 0
  %v287 = vsel %vm182, %v129, 0
  %v290 = vsel %vm182, %v130, 0
  %292 = vmatprep.subr.bf16.mxu0 %v124
  %293 = vmatpush1.bf16.msra.mxu0 %v123
  %294 = vmatprep.subr.bf16.mxu0 %v284
  %295 = vmatpush1.bf16.msra.mxu0 %v281
  %296 = vmatprep.subr.bf16.mxu0 0
  %297 = vmatpush1.bf16.msra.mxu0 0
  %298 = vmatprep.subr.bf16.mxu0 0
  %299 = vmatpush1.bf16.msra.mxu0 0
  %300 = vmatprep.subr.bf16.mxu0 0
  %301 = vmatpush1.bf16.msra.mxu0 0
  %302 = vmatprep.subr.bf16.mxu0 0
  %303 = vmatpush1.bf16.msra.mxu0 0
  %304 = vmatprep.subr.bf16.mxu0 0
  %305 = vmatpush1.bf16.msra.mxu0 0
  %306 = vmatprep.subr.bf16.mxu0 0
  %307 = vmatpush1.bf16.msra.mxu0 0
  %308 = vmatprep.subr.bf16.mxu0 0
  %309 = vmatpush1.bf16.msra.mxu0 0
  %310 = vmatprep.subr.bf16.mxu0 0
  %311 = vmatpush1.bf16.msra.mxu0 0
  %312 = vmatprep.subr.bf16.mxu0 0
  %313 = vmatpush1.bf16.msra.mxu0 0
  %314 = vmatprep.subr.bf16.mxu0 0
  %315 = vmatpush1.bf16.msra.mxu0 0
  %316 = vmatprep.subr.bf16.mxu0 0
  %317 = vmatpush1.bf16.msra.mxu0 0
  %318 = vmatprep.subr.bf16.mxu0 0
  %319 = vmatpush1.bf16.msra.mxu0 0
  %320 = vmatprep.subr.bf16.mxu0 0
  %321 = vmatpush1.bf16.msra.mxu0 0
  %322 = vmatprep.subr.bf16.mxu0 0
  %323 = vmatpush1.bf16.msra.mxu0 0
  %324 = vmatprep.mubr.bf16.mxu0 0
  %325 = vmatmul.mubr.bf16.gmra.mrb[0].mxu0 %v278
  %v326 = vpop.f32.mrb[0].mxu0
  %v327 = vadd.f32 %v230, %v326
  %v328 = vpop.f32.mrb[0].mxu0
  %v329 = vadd.f32 %v232, %v328
  %v330 = vpop.f32.mrb[0].mxu0
  %v331 = vpop.f32.mrb[0].mxu0
  %332 = vdwg.mxu0
  %333 = vmatprep.subr.bf16.mxu0 %v126
  %334 = vmatpush1.bf16.msra.mxu0 %v125
  %335 = vmatprep.subr.bf16.mxu0 %v290
  %336 = vmatpush1.bf16.msra.mxu0 %v287
  %337 = vmatprep.subr.bf16.mxu0 0
  %338 = vmatpush1.bf16.msra.mxu0 0
  %339 = vmatprep.subr.bf16.mxu0 0
  %340 = vmatpush1.bf16.msra.mxu0 0
  %341 = vmatprep.subr.bf16.mxu0 0
  %342 = vmatpush1.bf16.msra.mxu0 0
  %343 = vmatprep.subr.bf16.mxu0 0
  %344 = vmatpush1.bf16.msra.mxu0 0
  %345 = vmatprep.subr.bf16.mxu0 0
  %346 = vmatpush1.bf16.msra.mxu0 0
  %347 = vmatprep.subr.bf16.mxu0 0
  %348 = vmatpush1.bf16.msra.mxu0 0
  %349 = vmatprep.subr.bf16.mxu0 0
  %350 = vmatpush1.bf16.msra.mxu0 0
  %351 = vmatprep.subr.bf16.mxu0 0
  %352 = vmatpush1.bf16.msra.mxu0 0
  %353 = vmatprep.subr.bf16.mxu0 0
  %354 = vmatpush1.bf16.msra.mxu0 0
  %355 = vmatprep.subr.bf16.mxu0 0
  %356 = vmatpush1.bf16.msra.mxu0 0
  %357 = vmatprep.subr.bf16.mxu0 0
  %358 = vmatpush1.bf16.msra.mxu0 0
  %359 = vmatprep.subr.bf16.mxu0 0
  %360 = vmatpush1.bf16.msra.mxu0 0
  %361 = vmatprep.subr.bf16.mxu0 0
  %362 = vmatpush1.bf16.msra.mxu0 0
  %363 = vmatprep.subr.bf16.mxu0 0
  %364 = vmatpush1.bf16.msra.mxu0 0
  %365 = vmatprep.mubr.bf16.mxu0 0
  %366 = vmatmul.mubr.bf16.gmra.mrb[0].mxu0 %v278
  %v367 = vpop.f32.mrb[0].mxu0
  %v368 = vadd.f32 %v271, %v367
  %v369 = vpop.f32.mrb[0].mxu0
  %v370 = vadd.f32 %v273, %v369
  %v371 = vpop.f32.mrb[0].mxu0
  %v372 = vpop.f32.mrb[0].mxu0
  %373 = vdwg.mxu0
  %374 = vrot.lane.b32.xlu0 %v27, 113
  %v375 = vpop.permute.xlu0 %374
  %376 = vrot.lane.b32.xlu0 %v28, 113
  %v377 = vpop.permute.xlu0 %376
  %378 = vrot.lane.b32.xlu0 %v29, 113
  %v379 = vpop.permute.xlu0 %378
  %380 = vrot.lane.b32.xlu0 %v30, 113
  %v381 = vpop.permute.xlu0 %380
  %vm382 = vcmp.lt.s32.totalorder %v32, 113
  %v383 = vsel %vm382, %v379, %v381
  %v384 = vsel %vm382, %v377, %v379
  %v385 = vsel %vm382, %v375, %v377
  %v386 = vsel %vm382, %v381, %v375
  %vm387 = vmand %vm52, %vm56
  %vm388 = vmand %vm53, %vm57
  %vm389 = vmand %vm54, %vm58
  %vm390 = vmand %vm55, %vm59
  %v391 = vsel %vm387, %v385, 0.0
  %v392 = vsel %vm388, %v384, 0.0
  %v393 = vsel %vm389, %v383, 0.0
  %v394 = vsel %vm390, %v386, 0.0
  %395 = vrot.lane.b32.xlu0 %v27, 112
  %v396 = vpop.permute.xlu0 %395
  %397 = vrot.lane.b32.xlu0 %v28, 112
  %v398 = vpop.permute.xlu0 %397
  %399 = vrot.lane.b32.xlu0 %v29, 112
  %v400 = vpop.permute.xlu0 %399
  %401 = vrot.lane.b32.xlu0 %v30, 112
  %v402 = vpop.permute.xlu0 %401
  %vm403 = vcmp.lt.s32.totalorder %v32, 112
  %v404 = vsel %vm403, %v400, %v402
  %v405 = vsel %vm403, %v398, %v400
  %v406 = vsel %vm403, %v396, %v398
  %v407 = vsel %vm403, %v402, %v396
  %v408 = vsel %vm52, %v406, 0.0
  %v409 = vsel %vm53, %v405, 0.0
  %v410 = vsel %vm54, %v404, 0.0
  %v411 = vsel %vm55, %v407, 0.0
  %412 = vrot.lane.b32.xlu0 %v27, 111
  %v413 = vpop.permute.xlu0 %412
  %414 = vrot.lane.b32.xlu0 %v28, 111
  %v415 = vpop.permute.xlu0 %414
  %416 = vrot.lane.b32.xlu0 %v29, 111
  %v417 = vpop.permute.xlu0 %416
  %418 = vrot.lane.b32.xlu0 %v30, 111
  %v419 = vpop.permute.xlu0 %418
  %vm420 = vcmp.lt.s32.totalorder %v32, 111
  %v421 = vsel %vm420, %v417, %v419
  %v422 = vsel %vm420, %v415, %v417
  %v423 = vsel %vm420, %v413, %v415
  %v424 = vsel %vm420, %v419, %v413
  %vm425 = vmand %vm52, %vm60
  %vm426 = vmand %vm53, %vm61
  %vm427 = vmand %vm54, %vm62
  %vm428 = vmand %vm55, %vm63
  %v429 = vsel %vm425, %v423, 0.0
  %v430 = vsel %vm426, %v422, 0.0
  %v431 = vsel %vm427, %v421, 0.0
  %v432 = vsel %vm428, %v424, 0.0
  %v433 = vpack.c.bf16 %v408, %v391
  %v434 = vpack.c.bf16 %v409, %v392
  %v435 = vpack.c.bf16 %v410, %v393
  %v436 = vpack.c.bf16 %v411, %v394
  %v437 = vpack.c.bf16 %v429, %v429
  %v438 = vpack.c.bf16 %v430, %v430
  %v439 = vpack.c.bf16 %v431, %v431
  %v440 = vpack.c.bf16 %v432, %v432
  %s441 = scalar_lea.vmem %s1, 16
  %v442 = vld [vmem:[%s441] sm:$0xff]
  %v443 = vpack.c.bf16 %v442, %v442
  %v445 = vsel %vm178, %v443, 0
  %v448 = vsel %vm182, %v437, 0
  %v451 = vsel %vm182, %v438, 0
  %v454 = vsel %vm182, %v439, 0
  %v457 = vsel %vm182, %v440, 0
  %459 = vmatprep.subr.bf16.mxu0 %v434
  %460 = vmatpush1.bf16.msra.mxu0 %v433
  %461 = vmatprep.subr.bf16.mxu0 %v451
  %462 = vmatpush1.bf16.msra.mxu0 %v448
  %463 = vmatprep.subr.bf16.mxu0 0
  %464 = vmatpush1.bf16.msra.mxu0 0
  %465 = vmatprep.subr.bf16.mxu0 0
  %466 = vmatpush1.bf16.msra.mxu0 0
  %467 = vmatprep.subr.bf16.mxu0 0
  %468 = vmatpush1.bf16.msra.mxu0 0
  %469 = vmatprep.subr.bf16.mxu0 0
  %470 = vmatpush1.bf16.msra.mxu0 0
  %471 = vmatprep.subr.bf16.mxu0 0
  %472 = vmatpush1.bf16.msra.mxu0 0
  %473 = vmatprep.subr.bf16.mxu0 0
  %474 = vmatpush1.bf16.msra.mxu0 0
  %475 = vmatprep.subr.bf16.mxu0 0
  %476 = vmatpush1.bf16.msra.mxu0 0
  %477 = vmatprep.subr.bf16.mxu0 0
  %478 = vmatpush1.bf16.msra.mxu0 0
  %479 = vmatprep.subr.bf16.mxu0 0
  %480 = vmatpush1.bf16.msra.mxu0 0
  %481 = vmatprep.subr.bf16.mxu0 0
  %482 = vmatpush1.bf16.msra.mxu0 0
  %483 = vmatprep.subr.bf16.mxu0 0
  %484 = vmatpush1.bf16.msra.mxu0 0
  %485 = vmatprep.subr.bf16.mxu0 0
  %486 = vmatpush1.bf16.msra.mxu0 0
  %487 = vmatprep.subr.bf16.mxu0 0
  %488 = vmatpush1.bf16.msra.mxu0 0
  %489 = vmatprep.subr.bf16.mxu0 0
  %490 = vmatpush1.bf16.msra.mxu0 0
  %491 = vmatprep.mubr.bf16.mxu0 0
  %492 = vmatmul.mubr.bf16.gmra.mrb[0].mxu0 %v445
  %v493 = vpop.f32.mrb[0].mxu0
  %v494 = vadd.f32 0.0, %v493
  %v495 = vpop.f32.mrb[0].mxu0
  %v496 = vadd.f32 0.0, %v495
  %v497 = vpop.f32.mrb[0].mxu0
  %v498 = vpop.f32.mrb[0].mxu0
  %499 = vdwg.mxu0
  %500 = vmatprep.subr.bf16.mxu0 %v436
  %501 = vmatpush1.bf16.msra.mxu0 %v435
  %502 = vmatprep.subr.bf16.mxu0 %v457
  %503 = vmatpush1.bf16.msra.mxu0 %v454
  %504 = vmatprep.subr.bf16.mxu0 0
  %505 = vmatpush1.bf16.msra.mxu0 0
  %506 = vmatprep.subr.bf16.mxu0 0
  %507 = vmatpush1.bf16.msra.mxu0 0
  %508 = vmatprep.subr.bf16.mxu0 0
  %509 = vmatpush1.bf16.msra.mxu0 0
  %510 = vmatprep.subr.bf16.mxu0 0
  %511 = vmatpush1.bf16.msra.mxu0 0
  %512 = vmatprep.subr.bf16.mxu0 0
  %513 = vmatpush1.bf16.msra.mxu0 0
  %514 = vmatprep.subr.bf16.mxu0 0
  %515 = vmatpush1.bf16.msra.mxu0 0
  %516 = vmatprep.subr.bf16.mxu0 0
  %517 = vmatpush1.bf16.msra.mxu0 0
  %518 = vmatprep.subr.bf16.mxu0 0
  %519 = vmatpush1.bf16.msra.mxu0 0
  %520 = vmatprep.subr.bf16.mxu0 0
  %521 = vmatpush1.bf16.msra.mxu0 0
  %522 = vmatprep.subr.bf16.mxu0 0
  %523 = vmatpush1.bf16.msra.mxu0 0
  %524 = vmatprep.subr.bf16.mxu0 0
  %525 = vmatpush1.bf16.msra.mxu0 0
  %526 = vmatprep.subr.bf16.mxu0 0
  %527 = vmatpush1.bf16.msra.mxu0 0
  %528 = vmatprep.subr.bf16.mxu0 0
  %529 = vmatpush1.bf16.msra.mxu0 0
  %530 = vmatprep.subr.bf16.mxu0 0
  %531 = vmatpush1.bf16.msra.mxu0 0
  %532 = vmatprep.mubr.bf16.mxu0 0
  %533 = vmatmul.mubr.bf16.gmra.mrb[0].mxu0 %v445
  %v534 = vpop.f32.mrb[0].mxu0
  %v535 = vadd.f32 0.0, %v534
  %v536 = vpop.f32.mrb[0].mxu0
  %v537 = vadd.f32 0.0, %v536
  %v538 = vpop.f32.mrb[0].mxu0
  %v539 = vpop.f32.mrb[0].mxu0
  %540 = vdwg.mxu0
  %v541 = vadd.f32 %v327, %v494
  %v542 = vadd.f32 %v329, %v496
  %v543 = vadd.f32 %v368, %v535
  %v544 = vadd.f32 %v370, %v537
  %v545 = vld [vmem:[%s2] sm:$0xff]
  %v546 = vld [vmem:[%s3] sm:$0xff]
  %v547 = vadd.f32 %v541, %v542
  %v548 = vadd.f32 %v547, %v543
  %v549 = vadd.f32 %v548, %v544
  %550 = vadd.xlane.f32.xlu0 %v549
  %v551 = vpop.xlane.xlu0 %550
  %v552 = vmul.f32 %v551, 0.001953125
  %v553 = vmul.f32 %v541, %v541
  %v554 = vmul.f32 %v542, %v542
  %v555 = vmul.f32 %v543, %v543
  %v556 = vmul.f32 %v544, %v544
  %v557 = vadd.f32 %v553, %v554
  %v558 = vadd.f32 %v557, %v555
  %v559 = vadd.f32 %v558, %v556
  %560 = vadd.xlane.f32.xlu0 %v559
  %v561 = vpop.xlane.xlu0 %560
  %v562 = vmul.f32 %v561, 0.001953125
  %v563 = vmul.f32 %v552, %v552
  %v564 = vsub.f32 %v562, %v563
  %v565 = vsub.f32 %v541, %v552
  %v566 = vsub.f32 %v542, %v552
  %v567 = vsub.f32 %v543, %v552
  %v568 = vsub.f32 %v544, %v552
  %v569 = vadd.f32 %v564, 1e-05
  %v570 = vrsqrt.pop %v569
  %v571 = vmul.f32 %v565, %v570
  %v572 = vmul.f32 %v566, %v570
  %v573 = vmul.f32 %v567, %v570
  %v574 = vmul.f32 %v568, %v570
  %576 = vset.pattern.permute.xlu0 0
  %577 = vperm.xlu0 %576, %v545
  %v578 = vpop.permute.xlu0 %577
  %v580 = vmul.f32 %v571, %v578
  %v581 = vmul.f32 %v572, %v578
  %v582 = vmul.f32 %v573, %v578
  %v583 = vmul.f32 %v574, %v578
  %585 = vset.pattern.permute.xlu0 0
  %586 = vperm.xlu0 %585, %v546
  %v587 = vpop.permute.xlu0 %586
  %v589 = vadd.f32 %v580, %v587
  %v590 = vadd.f32 %v581, %v587
  %v591 = vadd.f32 %v582, %v587
  %v592 = vadd.f32 %v583, %v587
  %v593 = vmax.f32 %v589, 0.0
  %v594 = vmax.f32 %v590, 0.0
  %v595 = vmax.f32 %v591, 0.0
  %v596 = vmax.f32 %v592, 0.0
  %597 = vrot.lane.b32.xlu0 %v593, 17
  %v598 = vpop.permute.xlu0 %597
  %599 = vrot.lane.b32.xlu0 %v594, 17
  %v600 = vpop.permute.xlu0 %599
  %601 = vrot.lane.b32.xlu0 %v595, 17
  %v602 = vpop.permute.xlu0 %601
  %603 = vrot.lane.b32.xlu0 %v596, 17
  %v604 = vpop.permute.xlu0 %603
  %v605 = vsel %vm72, %v602, %v604
  %v606 = vsel %vm72, %v600, %v602
  %v607 = vsel %vm72, %v598, %v600
  %v608 = vsel %vm72, %v604, %v598
  %v609 = vsel %vm77, %v608, 0.0
  %v610 = vsel %vm78, %v607, 0.0
  %v611 = vsel %vm79, %v606, 0.0
  %v612 = vsel %vm80, %v605, 0.0
  %613 = vrot.lane.b32.xlu0 %v593, 16
  %v614 = vpop.permute.xlu0 %613
  %615 = vrot.lane.b32.xlu0 %v594, 16
  %v616 = vpop.permute.xlu0 %615
  %617 = vrot.lane.b32.xlu0 %v595, 16
  %v618 = vpop.permute.xlu0 %617
  %619 = vrot.lane.b32.xlu0 %v596, 16
  %v620 = vpop.permute.xlu0 %619
  %v621 = vsel %vm93, %v618, %v620
  %v622 = vsel %vm93, %v616, %v618
  %v623 = vsel %vm93, %v614, %v616
  %v624 = vsel %vm93, %v620, %v614
  %v625 = vsel %vm48, %v624, 0.0
  %v626 = vsel %vm49, %v623, 0.0
  %v627 = vsel %vm50, %v622, 0.0
  %v628 = vsel %vm51, %v621, 0.0
  %629 = vrot.lane.b32.xlu0 %v593, 15
  %v630 = vpop.permute.xlu0 %629
  %631 = vrot.lane.b32.xlu0 %v594, 15
  %v632 = vpop.permute.xlu0 %631
  %633 = vrot.lane.b32.xlu0 %v595, 15
  %v634 = vpop.permute.xlu0 %633
  %635 = vrot.lane.b32.xlu0 %v596, 15
  %v636 = vpop.permute.xlu0 %635
  %v637 = vsel %vm110, %v634, %v636
  %v638 = vsel %vm110, %v632, %v634
  %v639 = vsel %vm110, %v630, %v632
  %v640 = vsel %vm110, %v636, %v630
  %v641 = vsel %vm115, %v640, 0.0
  %v642 = vsel %vm116, %v639, 0.0
  %v643 = vsel %vm117, %v638, 0.0
  %v644 = vsel %vm118, %v637, 0.0
  %v645 = vpack.c.bf16 %v625, %v609
  %v646 = vpack.c.bf16 %v626, %v610
  %v647 = vpack.c.bf16 %v627, %v611
  %v648 = vpack.c.bf16 %v628, %v612
  %v649 = vpack.c.bf16 %v641, %v641
  %v650 = vpack.c.bf16 %v642, %v642
  %v651 = vpack.c.bf16 %v643, %v643
  %v652 = vpack.c.bf16 %v644, %v644
  %v653 = vld [vmem:[%s4] sm:$0xff]
  %v654 = vpack.c.bf16 %v653, %v653
  %655 = vrot.lane.b32.xlu0 %v593, 1
  %v656 = vpop.permute.xlu0 %655
  %657 = vrot.lane.b32.xlu0 %v594, 1
  %v658 = vpop.permute.xlu0 %657
  %659 = vrot.lane.b32.xlu0 %v595, 1
  %v660 = vpop.permute.xlu0 %659
  %661 = vrot.lane.b32.xlu0 %v596, 1
  %v662 = vpop.permute.xlu0 %661
  %v663 = vsel %vm141, %v660, %v662
  %v664 = vsel %vm141, %v658, %v660
  %v665 = vsel %vm141, %v656, %v658
  %v666 = vsel %vm141, %v662, %v656
  %v667 = vsel %vm56, %v666, 0.0
  %v668 = vsel %vm57, %v665, 0.0
  %v669 = vsel %vm58, %v664, 0.0
  %v670 = vsel %vm59, %v663, 0.0
  %671 = vrot.lane.b32.xlu0 %v593, 127
  %v672 = vpop.permute.xlu0 %671
  %673 = vrot.lane.b32.xlu0 %v594, 127
  %v674 = vpop.permute.xlu0 %673
  %675 = vrot.lane.b32.xlu0 %v595, 127
  %v676 = vpop.permute.xlu0 %675
  %677 = vrot.lane.b32.xlu0 %v596, 127
  %v678 = vpop.permute.xlu0 %677
  %v679 = vsel %vm158, %v676, %v678
  %v680 = vsel %vm158, %v674, %v676
  %v681 = vsel %vm158, %v672, %v674
  %v682 = vsel %vm158, %v678, %v672
  %v683 = vsel %vm60, %v681, 0.0
  %v684 = vsel %vm61, %v680, 0.0
  %v685 = vsel %vm62, %v679, 0.0
  %v686 = vsel %vm63, %v682, 0.0
  %v687 = vpack.c.bf16 %v593, %v667
  %v688 = vpack.c.bf16 %v594, %v668
  %v689 = vpack.c.bf16 %v595, %v669
  %v690 = vpack.c.bf16 %v596, %v670
  %v691 = vpack.c.bf16 %v683, %v683
  %v692 = vpack.c.bf16 %v684, %v684
  %v693 = vpack.c.bf16 %v685, %v685
  %v694 = vpack.c.bf16 %v686, %v686
  %s695 = scalar_lea.vmem %s4, 8
  %v696 = vld [vmem:[%s695] sm:$0xff]
  %v697 = vpack.c.bf16 %v696, %v696
  %v699 = vsel %vm178, %v697, 0
  %v702 = vsel %vm182, %v691, 0
  %v705 = vsel %vm182, %v692, 0
  %v708 = vsel %vm182, %v693, 0
  %v711 = vsel %vm182, %v694, 0
  %713 = vmatprep.subr.bf16.mxu0 %v688
  %714 = vmatpush1.bf16.msra.mxu0 %v687
  %715 = vmatprep.subr.bf16.mxu0 %v705
  %716 = vmatpush1.bf16.msra.mxu0 %v702
  %717 = vmatprep.subr.bf16.mxu0 0
  %718 = vmatpush1.bf16.msra.mxu0 0
  %719 = vmatprep.subr.bf16.mxu0 0
  %720 = vmatpush1.bf16.msra.mxu0 0
  %721 = vmatprep.subr.bf16.mxu0 0
  %722 = vmatpush1.bf16.msra.mxu0 0
  %723 = vmatprep.subr.bf16.mxu0 0
  %724 = vmatpush1.bf16.msra.mxu0 0
  %725 = vmatprep.subr.bf16.mxu0 0
  %726 = vmatpush1.bf16.msra.mxu0 0
  %727 = vmatprep.subr.bf16.mxu0 0
  %728 = vmatpush1.bf16.msra.mxu0 0
  %729 = vmatprep.subr.bf16.mxu0 0
  %730 = vmatpush1.bf16.msra.mxu0 0
  %731 = vmatprep.subr.bf16.mxu0 0
  %732 = vmatpush1.bf16.msra.mxu0 0
  %733 = vmatprep.subr.bf16.mxu0 0
  %734 = vmatpush1.bf16.msra.mxu0 0
  %735 = vmatprep.subr.bf16.mxu0 0
  %736 = vmatpush1.bf16.msra.mxu0 0
  %737 = vmatprep.subr.bf16.mxu0 0
  %738 = vmatpush1.bf16.msra.mxu0 0
  %739 = vmatprep.subr.bf16.mxu0 0
  %740 = vmatpush1.bf16.msra.mxu0 0
  %741 = vmatprep.subr.bf16.mxu0 0
  %742 = vmatpush1.bf16.msra.mxu0 0
  %743 = vmatprep.subr.bf16.mxu0 0
  %744 = vmatpush1.bf16.msra.mxu0 0
  %745 = vmatprep.mubr.bf16.mxu0 0
  %746 = vmatmul.mubr.bf16.gmra.mrb[0].mxu0 %v699
  %v747 = vpop.f32.mrb[0].mxu0
  %v748 = vadd.f32 0.0, %v747
  %v749 = vpop.f32.mrb[0].mxu0
  %v750 = vadd.f32 0.0, %v749
  %v751 = vpop.f32.mrb[0].mxu0
  %v752 = vpop.f32.mrb[0].mxu0
  %753 = vdwg.mxu0
  %754 = vmatprep.subr.bf16.mxu0 %v690
  %755 = vmatpush1.bf16.msra.mxu0 %v689
  %756 = vmatprep.subr.bf16.mxu0 %v711
  %757 = vmatpush1.bf16.msra.mxu0 %v708
  %758 = vmatprep.subr.bf16.mxu0 0
  %759 = vmatpush1.bf16.msra.mxu0 0
  %760 = vmatprep.subr.bf16.mxu0 0
  %761 = vmatpush1.bf16.msra.mxu0 0
  %762 = vmatprep.subr.bf16.mxu0 0
  %763 = vmatpush1.bf16.msra.mxu0 0
  %764 = vmatprep.subr.bf16.mxu0 0
  %765 = vmatpush1.bf16.msra.mxu0 0
  %766 = vmatprep.subr.bf16.mxu0 0
  %767 = vmatpush1.bf16.msra.mxu0 0
  %768 = vmatprep.subr.bf16.mxu0 0
  %769 = vmatpush1.bf16.msra.mxu0 0
  %770 = vmatprep.subr.bf16.mxu0 0
  %771 = vmatpush1.bf16.msra.mxu0 0
  %772 = vmatprep.subr.bf16.mxu0 0
  %773 = vmatpush1.bf16.msra.mxu0 0
  %774 = vmatprep.subr.bf16.mxu0 0
  %775 = vmatpush1.bf16.msra.mxu0 0
  %776 = vmatprep.subr.bf16.mxu0 0
  %777 = vmatpush1.bf16.msra.mxu0 0
  %778 = vmatprep.subr.bf16.mxu0 0
  %779 = vmatpush1.bf16.msra.mxu0 0
  %780 = vmatprep.subr.bf16.mxu0 0
  %781 = vmatpush1.bf16.msra.mxu0 0
  %782 = vmatprep.subr.bf16.mxu0 0
  %783 = vmatpush1.bf16.msra.mxu0 0
  %784 = vmatprep.subr.bf16.mxu0 0
  %785 = vmatpush1.bf16.msra.mxu0 0
  %786 = vmatprep.mubr.bf16.mxu0 0
  %787 = vmatmul.mubr.bf16.gmra.mrb[0].mxu0 %v699
  %v788 = vpop.f32.mrb[0].mxu0
  %v789 = vadd.f32 0.0, %v788
  %v790 = vpop.f32.mrb[0].mxu0
  %v791 = vadd.f32 0.0, %v790
  %v792 = vpop.f32.mrb[0].mxu0
  %v793 = vpop.f32.mrb[0].mxu0
  %794 = vdwg.mxu0
  %v796 = vsel %vm178, %v654, 0
  %v799 = vsel %vm182, %v649, 0
  %v802 = vsel %vm182, %v650, 0
  %v805 = vsel %vm182, %v651, 0
  %v808 = vsel %vm182, %v652, 0
  %810 = vmatprep.subr.bf16.mxu0 %v646
  %811 = vmatpush1.bf16.msra.mxu0 %v645
  %812 = vmatprep.subr.bf16.mxu0 %v802
  %813 = vmatpush1.bf16.msra.mxu0 %v799
  %814 = vmatprep.subr.bf16.mxu0 0
  %815 = vmatpush1.bf16.msra.mxu0 0
  %816 = vmatprep.subr.bf16.mxu0 0
  %817 = vmatpush1.bf16.msra.mxu0 0
  %818 = vmatprep.subr.bf16.mxu0 0
  %819 = vmatpush1.bf16.msra.mxu0 0
  %820 = vmatprep.subr.bf16.mxu0 0
  %821 = vmatpush1.bf16.msra.mxu0 0
  %822 = vmatprep.subr.bf16.mxu0 0
  %823 = vmatpush1.bf16.msra.mxu0 0
  %824 = vmatprep.subr.bf16.mxu0 0
  %825 = vmatpush1.bf16.msra.mxu0 0
  %826 = vmatprep.subr.bf16.mxu0 0
  %827 = vmatpush1.bf16.msra.mxu0 0
  %828 = vmatprep.subr.bf16.mxu0 0
  %829 = vmatpush1.bf16.msra.mxu0 0
  %830 = vmatprep.subr.bf16.mxu0 0
  %831 = vmatpush1.bf16.msra.mxu0 0
  %832 = vmatprep.subr.bf16.mxu0 0
  %833 = vmatpush1.bf16.msra.mxu0 0
  %834 = vmatprep.subr.bf16.mxu0 0
  %835 = vmatpush1.bf16.msra.mxu0 0
  %836 = vmatprep.subr.bf16.mxu0 0
  %837 = vmatpush1.bf16.msra.mxu0 0
  %838 = vmatprep.subr.bf16.mxu0 0
  %839 = vmatpush1.bf16.msra.mxu0 0
  %840 = vmatprep.subr.bf16.mxu0 0
  %841 = vmatpush1.bf16.msra.mxu0 0
  %842 = vmatprep.mubr.bf16.mxu0 0
  %843 = vmatmul.mubr.bf16.gmra.mrb[0].mxu0 %v796
  %v844 = vpop.f32.mrb[0].mxu0
  %v845 = vadd.f32 %v748, %v844
  %v846 = vpop.f32.mrb[0].mxu0
  %v847 = vadd.f32 %v750, %v846
  %v848 = vpop.f32.mrb[0].mxu0
  %v849 = vpop.f32.mrb[0].mxu0
  %850 = vdwg.mxu0
  %851 = vmatprep.subr.bf16.mxu0 %v648
  %852 = vmatpush1.bf16.msra.mxu0 %v647
  %853 = vmatprep.subr.bf16.mxu0 %v808
  %854 = vmatpush1.bf16.msra.mxu0 %v805
  %855 = vmatprep.subr.bf16.mxu0 0
  %856 = vmatpush1.bf16.msra.mxu0 0
  %857 = vmatprep.subr.bf16.mxu0 0
  %858 = vmatpush1.bf16.msra.mxu0 0
  %859 = vmatprep.subr.bf16.mxu0 0
  %860 = vmatpush1.bf16.msra.mxu0 0
  %861 = vmatprep.subr.bf16.mxu0 0
  %862 = vmatpush1.bf16.msra.mxu0 0
  %863 = vmatprep.subr.bf16.mxu0 0
  %864 = vmatpush1.bf16.msra.mxu0 0
  %865 = vmatprep.subr.bf16.mxu0 0
  %866 = vmatpush1.bf16.msra.mxu0 0
  %867 = vmatprep.subr.bf16.mxu0 0
  %868 = vmatpush1.bf16.msra.mxu0 0
  %869 = vmatprep.subr.bf16.mxu0 0
  %870 = vmatpush1.bf16.msra.mxu0 0
  %871 = vmatprep.subr.bf16.mxu0 0
  %872 = vmatpush1.bf16.msra.mxu0 0
  %873 = vmatprep.subr.bf16.mxu0 0
  %874 = vmatpush1.bf16.msra.mxu0 0
  %875 = vmatprep.subr.bf16.mxu0 0
  %876 = vmatpush1.bf16.msra.mxu0 0
  %877 = vmatprep.subr.bf16.mxu0 0
  %878 = vmatpush1.bf16.msra.mxu0 0
  %879 = vmatprep.subr.bf16.mxu0 0
  %880 = vmatpush1.bf16.msra.mxu0 0
  %881 = vmatprep.subr.bf16.mxu0 0
  %882 = vmatpush1.bf16.msra.mxu0 0
  %883 = vmatprep.mubr.bf16.mxu0 0
  %884 = vmatmul.mubr.bf16.gmra.mrb[0].mxu0 %v796
  %v885 = vpop.f32.mrb[0].mxu0
  %v886 = vadd.f32 %v789, %v885
  %v887 = vpop.f32.mrb[0].mxu0
  %v888 = vadd.f32 %v791, %v887
  %v889 = vpop.f32.mrb[0].mxu0
  %v890 = vpop.f32.mrb[0].mxu0
  %891 = vdwg.mxu0
  %892 = vrot.lane.b32.xlu0 %v593, 113
  %v893 = vpop.permute.xlu0 %892
  %894 = vrot.lane.b32.xlu0 %v594, 113
  %v895 = vpop.permute.xlu0 %894
  %896 = vrot.lane.b32.xlu0 %v595, 113
  %v897 = vpop.permute.xlu0 %896
  %898 = vrot.lane.b32.xlu0 %v596, 113
  %v899 = vpop.permute.xlu0 %898
  %v900 = vsel %vm382, %v897, %v899
  %v901 = vsel %vm382, %v895, %v897
  %v902 = vsel %vm382, %v893, %v895
  %v903 = vsel %vm382, %v899, %v893
  %v904 = vsel %vm387, %v902, 0.0
  %v905 = vsel %vm388, %v901, 0.0
  %v906 = vsel %vm389, %v900, 0.0
  %v907 = vsel %vm390, %v903, 0.0
  %908 = vrot.lane.b32.xlu0 %v593, 112
  %v909 = vpop.permute.xlu0 %908
  %910 = vrot.lane.b32.xlu0 %v594, 112
  %v911 = vpop.permute.xlu0 %910
  %912 = vrot.lane.b32.xlu0 %v595, 112
  %v913 = vpop.permute.xlu0 %912
  %914 = vrot.lane.b32.xlu0 %v596, 112
  %v915 = vpop.permute.xlu0 %914
  %v916 = vsel %vm403, %v913, %v915
  %v917 = vsel %vm403, %v911, %v913
  %v918 = vsel %vm403, %v909, %v911
  %v919 = vsel %vm403, %v915, %v909
  %v920 = vsel %vm52, %v918, 0.0
  %v921 = vsel %vm53, %v917, 0.0
  %v922 = vsel %vm54, %v916, 0.0
  %v923 = vsel %vm55, %v919, 0.0
  %924 = vrot.lane.b32.xlu0 %v593, 111
  %v925 = vpop.permute.xlu0 %924
  %926 = vrot.lane.b32.xlu0 %v594, 111
  %v927 = vpop.permute.xlu0 %926
  %928 = vrot.lane.b32.xlu0 %v595, 111
  %v929 = vpop.permute.xlu0 %928
  %930 = vrot.lane.b32.xlu0 %v596, 111
  %v931 = vpop.permute.xlu0 %930
  %v932 = vsel %vm420, %v929, %v931
  %v933 = vsel %vm420, %v927, %v929
  %v934 = vsel %vm420, %v925, %v927
  %v935 = vsel %vm420, %v931, %v925
  %v936 = vsel %vm425, %v934, 0.0
  %v937 = vsel %vm426, %v933, 0.0
  %v938 = vsel %vm427, %v932, 0.0
  %v939 = vsel %vm428, %v935, 0.0
  %v940 = vpack.c.bf16 %v920, %v904
  %v941 = vpack.c.bf16 %v921, %v905
  %v942 = vpack.c.bf16 %v922, %v906
  %v943 = vpack.c.bf16 %v923, %v907
  %v944 = vpack.c.bf16 %v936, %v936
  %v945 = vpack.c.bf16 %v937, %v937
  %v946 = vpack.c.bf16 %v938, %v938
  %v947 = vpack.c.bf16 %v939, %v939
  %s948 = scalar_lea.vmem %s4, 16
  %v949 = vld [vmem:[%s948] sm:$0xff]
  %v950 = vpack.c.bf16 %v949, %v949
  %v952 = vsel %vm178, %v950, 0
  %v955 = vsel %vm182, %v944, 0
  %v958 = vsel %vm182, %v945, 0
  %v961 = vsel %vm182, %v946, 0
  %v964 = vsel %vm182, %v947, 0
  %966 = vmatprep.subr.bf16.mxu0 %v941
  %967 = vmatpush1.bf16.msra.mxu0 %v940
  %968 = vmatprep.subr.bf16.mxu0 %v958
  %969 = vmatpush1.bf16.msra.mxu0 %v955
  %970 = vmatprep.subr.bf16.mxu0 0
  %971 = vmatpush1.bf16.msra.mxu0 0
  %972 = vmatprep.subr.bf16.mxu0 0
  %973 = vmatpush1.bf16.msra.mxu0 0
  %974 = vmatprep.subr.bf16.mxu0 0
  %975 = vmatpush1.bf16.msra.mxu0 0
  %976 = vmatprep.subr.bf16.mxu0 0
  %977 = vmatpush1.bf16.msra.mxu0 0
  %978 = vmatprep.subr.bf16.mxu0 0
  %979 = vmatpush1.bf16.msra.mxu0 0
  %980 = vmatprep.subr.bf16.mxu0 0
  %981 = vmatpush1.bf16.msra.mxu0 0
  %982 = vmatprep.subr.bf16.mxu0 0
  %983 = vmatpush1.bf16.msra.mxu0 0
  %984 = vmatprep.subr.bf16.mxu0 0
  %985 = vmatpush1.bf16.msra.mxu0 0
  %986 = vmatprep.subr.bf16.mxu0 0
  %987 = vmatpush1.bf16.msra.mxu0 0
  %988 = vmatprep.subr.bf16.mxu0 0
  %989 = vmatpush1.bf16.msra.mxu0 0
  %990 = vmatprep.subr.bf16.mxu0 0
  %991 = vmatpush1.bf16.msra.mxu0 0
  %992 = vmatprep.subr.bf16.mxu0 0
  %993 = vmatpush1.bf16.msra.mxu0 0
  %994 = vmatprep.subr.bf16.mxu0 0
  %995 = vmatpush1.bf16.msra.mxu0 0
  %996 = vmatprep.subr.bf16.mxu0 0
  %997 = vmatpush1.bf16.msra.mxu0 0
  %998 = vmatprep.mubr.bf16.mxu0 0
  %999 = vmatmul.mubr.bf16.gmra.mrb[0].mxu0 %v952
  %v1000 = vpop.f32.mrb[0].mxu0
  %v1001 = vadd.f32 0.0, %v1000
  %v1002 = vpop.f32.mrb[0].mxu0
  %v1003 = vadd.f32 0.0, %v1002
  %v1004 = vpop.f32.mrb[0].mxu0
  %v1005 = vpop.f32.mrb[0].mxu0
  %1006 = vdwg.mxu0
  %1007 = vmatprep.subr.bf16.mxu0 %v943
  %1008 = vmatpush1.bf16.msra.mxu0 %v942
  %1009 = vmatprep.subr.bf16.mxu0 %v964
  %1010 = vmatpush1.bf16.msra.mxu0 %v961
  %1011 = vmatprep.subr.bf16.mxu0 0
  %1012 = vmatpush1.bf16.msra.mxu0 0
  %1013 = vmatprep.subr.bf16.mxu0 0
  %1014 = vmatpush1.bf16.msra.mxu0 0
  %1015 = vmatprep.subr.bf16.mxu0 0
  %1016 = vmatpush1.bf16.msra.mxu0 0
  %1017 = vmatprep.subr.bf16.mxu0 0
  %1018 = vmatpush1.bf16.msra.mxu0 0
  %1019 = vmatprep.subr.bf16.mxu0 0
  %1020 = vmatpush1.bf16.msra.mxu0 0
  %1021 = vmatprep.subr.bf16.mxu0 0
  %1022 = vmatpush1.bf16.msra.mxu0 0
  %1023 = vmatprep.subr.bf16.mxu0 0
  %1024 = vmatpush1.bf16.msra.mxu0 0
  %1025 = vmatprep.subr.bf16.mxu0 0
  %1026 = vmatpush1.bf16.msra.mxu0 0
  %1027 = vmatprep.subr.bf16.mxu0 0
  %1028 = vmatpush1.bf16.msra.mxu0 0
  %1029 = vmatprep.subr.bf16.mxu0 0
  %1030 = vmatpush1.bf16.msra.mxu0 0
  %1031 = vmatprep.subr.bf16.mxu0 0
  %1032 = vmatpush1.bf16.msra.mxu0 0
  %1033 = vmatprep.subr.bf16.mxu0 0
  %1034 = vmatpush1.bf16.msra.mxu0 0
  %1035 = vmatprep.subr.bf16.mxu0 0
  %1036 = vmatpush1.bf16.msra.mxu0 0
  %1037 = vmatprep.subr.bf16.mxu0 0
  %1038 = vmatpush1.bf16.msra.mxu0 0
  %1039 = vmatprep.mubr.bf16.mxu0 0
  %1040 = vmatmul.mubr.bf16.gmra.mrb[0].mxu0 %v952
  %v1041 = vpop.f32.mrb[0].mxu0
  %v1042 = vadd.f32 0.0, %v1041
  %v1043 = vpop.f32.mrb[0].mxu0
  %v1044 = vadd.f32 0.0, %v1043
  %v1045 = vpop.f32.mrb[0].mxu0
  %v1046 = vpop.f32.mrb[0].mxu0
  %1047 = vdwg.mxu0
  %v1048 = vadd.f32 %v845, %v1001
  %v1049 = vadd.f32 %v847, %v1003
  %v1050 = vadd.f32 %v886, %v1042
  %v1051 = vadd.f32 %v888, %v1044
  %v1052 = vld [vmem:[%s5] sm:$0xff]
  %v1053 = vld [vmem:[%s6] sm:$0xff]
  %v1054 = vadd.f32 %v1048, %v1049
  %v1055 = vadd.f32 %v1054, %v1050
  %v1056 = vadd.f32 %v1055, %v1051
  %1057 = vadd.xlane.f32.xlu0 %v1056
  %v1058 = vpop.xlane.xlu0 %1057
  %v1059 = vmul.f32 %v1058, 0.001953125
  %v1060 = vmul.f32 %v1048, %v1048
  %v1061 = vmul.f32 %v1049, %v1049
  %v1062 = vmul.f32 %v1050, %v1050
  %v1063 = vmul.f32 %v1051, %v1051
  %v1064 = vadd.f32 %v1060, %v1061
  %v1065 = vadd.f32 %v1064, %v1062
  %v1066 = vadd.f32 %v1065, %v1063
  %1067 = vadd.xlane.f32.xlu0 %v1066
  %v1068 = vpop.xlane.xlu0 %1067
  %v1069 = vmul.f32 %v1068, 0.001953125
  %v1070 = vmul.f32 %v1059, %v1059
  %v1071 = vsub.f32 %v1069, %v1070
  %v1072 = vsub.f32 %v1048, %v1059
  %v1073 = vsub.f32 %v1049, %v1059
  %v1074 = vsub.f32 %v1050, %v1059
  %v1075 = vsub.f32 %v1051, %v1059
  %v1076 = vadd.f32 %v1071, 1e-05
  %v1077 = vrsqrt.pop %v1076
  %v1078 = vmul.f32 %v1072, %v1077
  %v1079 = vmul.f32 %v1073, %v1077
  %v1080 = vmul.f32 %v1074, %v1077
  %v1081 = vmul.f32 %v1075, %v1077
  %1083 = vset.pattern.permute.xlu0 0
  %1084 = vperm.xlu0 %1083, %v1052
  %v1085 = vpop.permute.xlu0 %1084
  %v1087 = vmul.f32 %v1078, %v1085
  %v1088 = vmul.f32 %v1079, %v1085
  %v1089 = vmul.f32 %v1080, %v1085
  %v1090 = vmul.f32 %v1081, %v1085
  %1092 = vset.pattern.permute.xlu0 0
  %1093 = vperm.xlu0 %1092, %v1053
  %v1094 = vpop.permute.xlu0 %1093
  %v1096 = vadd.f32 %v1087, %v1094
  %v1097 = vadd.f32 %v1088, %v1094
  %v1098 = vadd.f32 %v1089, %v1094
  %v1099 = vadd.f32 %v1090, %v1094
  %v1100 = vadd.f32 %v27, %v1096
  %v1101 = vadd.f32 %v28, %v1097
  %v1102 = vadd.f32 %v29, %v1098
  %v1103 = vadd.f32 %v30, %v1099
  %1104 = vst [vmem:[%s7] sm:$0xff] %v1100
  %1105 = vst [vmem:[%s7 + $0x8] sm:$0xff] %v1101
  %1106 = vst [vmem:[%s7 + $0x10] sm:$0xff] %v1102
  %1107 = vst [vmem:[%s7 + $0x18] sm:$0xff] %v1103
  // Predicated region
  $region30: #{residual_block.1} parent=0 // pred_check
    _
  $region31: #{residual_block.1} parent=0 // pred_check_branch
    %1109 = sbr.rel (0) target = $region33
  $region32: #{residual_block.1} parent=0 // pred_region
    _
  $region33: #{residual_block.1} parent=0 // pred_fallthru
    _
  // Predicated region
  $region34: #{residual_block.1} parent=0 // pred_check
    _
  $region35: #{residual_block.1} parent=0 // pred_check_branch
    %1111 = sbr.rel (0) target = $region37
  $region36: #{residual_block.1} parent=0 // pred_region
    _
  $region37: #{residual_block.1} parent=0 // pred_fallthru
    _

</llo_original>
